<compile_context>
chip_gen: v7x
topology: tpu7x:2x2x1
jax: 0.10.0
libtpu: 0.0.40
codegen_flags: <defaults>
</compile_context>

<pallas_src>
import functools

import jax
import jax.numpy as jnp
from jax.experimental import pallas as pl
from jax.experimental.pallas import tpu as pltpu


# ----------------------------- Pallas kernel --------------------------------
def _reward_mlp_kernel(obs_ref, act_ref, done_ref,
                       w1o_ref, w1a_ref, w1d_ref, b1_ref,
                       w2_ref, b2_ref, w3_ref, b3_ref,
                       out_ref, *, max_reward, clip):
    """Fused input composition + 3-layer ReLU MLP + clip for one batch tile.

    Block shapes (tb = batch tile):
      obs (tb, Dobs) f32   act (tb, Dact) f32   done (tb, 1) bf16 ({0,1} exact)
      out (1, tb) f32 (lane-dense row).  Weights/biases are whole-array,
      VMEM-resident blocks (constant index maps).
    """
    # bf16 casts happen here (VPU filler) instead of as separate XLA HBM passes.
    obs = obs_ref[...].astype(jnp.bfloat16)               # (tb, Dobs)
    act = act_ref[...].astype(jnp.bfloat16)               # (tb, Dact)
    done = done_ref[...].astype(jnp.float32)              # (tb, 1)

    # Layer 1.  Reference: x = [obs*(1-done), act*(1-done), done];  x @ W1.
    # The per-row scalar (1-done) commutes with the feature contraction, so the
    # concat AND the mask fuse into
    #   (1-done) * (obs @ W1o + act @ W1a) + done * w1d + b1
    # with all elementwise math staying in f32.
    z = (jnp.dot(obs, w1o_ref[...], preferred_element_type=jnp.float32)
         + jnp.dot(act, w1a_ref[...], preferred_element_type=jnp.float32))
    h = (1.0 - done) * z + done * w1d_ref[...] + b1_ref[...]
    h = jnp.maximum(h, 0.0)                                # ReLU, (tb, H1) f32

    # Layer 2: bf16 MXU matmul, f32 accumulate.
    h = jnp.dot(h.astype(jnp.bfloat16), w2_ref[...],
                preferred_element_type=jnp.float32) + b2_ref[...]
    h = jnp.maximum(h, 0.0)                                # (tb, H2) f32

    # Layer 3 (out_features = 1), emitted directly in lane-dense (1, tb)
    # orientation via a transposed-RHS contraction (the q @ k.T pattern):
    #   (1, H2) . (tb, H2)^T -> (1, tb)
    r = jax.lax.dot_general(w3_ref[...], h,
                            dimension_numbers=(((1,), (1,)), ((), ())),
                            preferred_element_type=jnp.float32)
    r = r + b3_ref[...]                                    # (1, tb)
    if clip:
        r = jnp.clip(r, -max_reward, max_reward)
    out_ref[...] = r.astype(out_ref.dtype)


# ------------------------------ Python wrappers -------------------------------
def init_reward_params(key, observation_dim, action_dim, hidden_dims,
                       state_only=False, use_done=True):
    """Deterministic PyTorch-Linear-style init: U(-1/sqrt(fan_in), 1/sqrt(fan_in))."""
    in_dim = observation_dim + action_dim * (not state_only) + (1 if use_done else 0)
    dims = [in_dim] + list(hidden_dims) + [1]
    params = []
    for d_in, d_out in zip(dims[:-1], dims[1:]):
        k_w, k_b, key = jax.random.split(key, 3)
        bound = 1.0 / jnp.sqrt(jnp.float32(d_in))
        w = jax.random.uniform(k_w, (d_in, d_out), jnp.float32, -bound, bound)
        b = jax.random.uniform(k_b, (1, d_out), jnp.float32, -bound, bound)
        params += [w, b]
    return tuple(params)


def prepare_reward_params(params, observation_dim, action_dim):
    """One-time parameter prep (hoisted out of the per-call path).

    Splits W1 into obs/act/done row-blocks so the concat + done-mask fuse into
    the kernel, casts hidden-layer matmul weights to bf16, and reshapes biases
    / the final weight row for in-kernel broadcasting.
    """
    w1, b1, w2, b2, w3, b3 = params
    Dobs, Dact = observation_dim, action_dim
    H1, H2 = w1.shape[1], w2.shape[1]
    return (
        w1[:Dobs].astype(jnp.bfloat16),                        # W1_obs  (Dobs, H1)
        w1[Dobs:Dobs + Dact].astype(jnp.bfloat16),             # W1_act  (Dact, H1)
        w1[Dobs + Dact:Dobs + Dact + 1].astype(jnp.float32),   # W1_done (1, H1)
        b1.reshape(1, H1).astype(jnp.float32),
        w2.astype(jnp.bfloat16),                               # (H1, H2)
        b2.reshape(1, H2).astype(jnp.float32),
        w3.reshape(1, H2).astype(jnp.float32),                 # (1, H2)
        b3.reshape(1, 1).astype(jnp.float32),
    )


def _lane_padded_row_bytes(d, itemsize):
    """VMEM bytes per batch row of a (tb, d) block (last dim padded to 128 lanes)."""
    return -(-d // 128) * 128 * itemsize


def reward_forward(obs, act, done, prepared_params, *, max_reward=10.0,
                   clip=True, block_rows=4096):
    """RewardModel.forward (state_only=False, use_done=True), fused in Pallas.

    block_rows: batch rows per grid step.  4096 fits comfortably on all TPU
    generations under the VMEM limit set below; v6e can go to 8k-16k, on v7x
    prefer >= 2 grid steps so both TensorCores are used via the "parallel" axis.
    """
    B, Dobs = obs.shape
    Dact = act.shape[-1]
    (w1o, w1a, w1d, b1, w2, b2, w3, b3) = prepared_params
    H1, H2 = w2.shape

    # done is {0,1}: bf16 is exact and halves that lane-padded (tb, 1) VMEM
    # column (the cast is a negligible B*2-byte pass vs ~84 B/row of inputs).
    done_bf = done.reshape(B, 1).astype(jnp.bfloat16)

    # Batch tiling.  No jnp.pad: grid = cdiv(B, tb) and the ragged last block
    # uses Pallas' padded-block semantics (garbage input rows only produce
    # garbage output rows, sliced off below) -> inputs read from HBM once.
    if B <= block_rows:
        tb = B
    else:
        tb = block_rows
        assert tb % 8 == 0, "block_rows must be a multiple of 8 (128 preferred)"
    n_tiles = pl.cdiv(B, tb)

    kernel = functools.partial(_reward_mlp_kernel, max_reward=max_reward, clip=clip)

    def row_spec(d):
        return pl.BlockSpec((tb, d), lambda i: (i, 0))

    def resident(a):  # whole array, VMEM-resident across grid steps
        return pl.BlockSpec(a.shape, lambda i: (0, 0))

    # Advisory cost so XLA schedules around this tiny, HBM-bound custom call.
    flops = 2 * B * ((Dobs + Dact + 1) * H1 + H1 * H2 + H2)
    weight_bytes = sum(int(a.size) * a.dtype.itemsize for a in prepared_params)
    bytes_accessed = int(B * (Dobs * obs.dtype.itemsize
                              + Dact * act.dtype.itemsize
                              + done_bf.dtype.itemsize + 4) + weight_bytes)
    cost = pl.CostEstimate(flops=flops, transcendentals=0,
                           bytes_accessed=bytes_accessed)

    # Double-buffered I/O window footprint per batch row (lane-padded); leave
    # headroom for in-kernel f32 intermediates, stay under v7x's 64 MiB VMEM.
    io_per_row = (_lane_padded_row_bytes(Dobs, obs.dtype.itemsize)
                  + _lane_padded_row_bytes(Dact, act.dtype.itemsize)
                  + _lane_padded_row_bytes(1, done_bf.dtype.itemsize)
                  + 8 * 4)                        # (1, tb) f32 output row block
    vmem_limit = int(min(40 * 2**20, max(16 * 2**20, 3 * 2 * io_per_row * tb)))

    out = pl.pallas_call(
        kernel,
        out_shape=jax.ShapeDtypeStruct((n_tiles, tb), jnp.float32),
        grid=(n_tiles,),
        in_specs=[
            row_spec(Dobs), row_spec(Dact), row_spec(1),
            resident(w1o), resident(w1a), resident(w1d), resident(b1),
            resident(w2), resident(b2), resident(w3), resident(b3),
        ],
        out_specs=pl.BlockSpec((1, tb), lambda i: (i, 0)),    # lane-dense row
        compiler_params=pltpu.CompilerParams(
            dimension_semantics=("parallel",),
            vmem_limit_bytes=vmem_limit),
        cost_estimate=cost,
    )(obs, act, done_bf, w1o, w1a, w1d, b1, w2, b2, w3, b3)

    # TODO(synk): only the default (state_only=False, use_done=True) input
    # composition is fused; other configs would need a variant kernel.
    # (n_tiles, tb) -> (B, 1); padded tail rows (if any) are dropped here.
    return out.reshape(n_tiles * tb)[:B].reshape(B, 1)


def _reference(obs, act, done, params, max_reward):
    """Pure-JAX f32 reference matching the PyTorch module."""
    w1, b1, w2, b2, w3, b3 = params
    x = jnp.concatenate([jnp.concatenate([obs, act], -1) * (1.0 - done), done], -1)
    h = jnp.maximum(x @ w1 + b1, 0.0)
    h = jnp.maximum(h @ w2 + b2, 0.0)
    return jnp.clip(h @ w3 + b3, -max_reward, max_reward)


# ---------------------------------- main -------------------------------------
if __name__ == "__main__":
    observation_dim = 16
    action_dim = 4
    hidden_dims = [32, 32]
    max_reward = 10.0

    key = jax.random.PRNGKey(0)
    k_obs, k_act, k_done, k_params = jax.random.split(key, 4)
    params = init_reward_params(k_params, observation_dim, action_dim, hidden_dims)
    prepared = prepare_reward_params(params, observation_dim, action_dim)

    fwd = jax.jit(functools.partial(reward_forward, max_reward=max_reward, clip=True))

    # --- small demo batch (single tile) ---
    batch = 8
    obs = jax.random.normal(k_obs, (batch, observation_dim), jnp.float32)
    act = jax.random.normal(k_act, (batch, action_dim), jnp.float32)
    done = (jax.random.uniform(k_done, (batch, 1)) < 0.3).astype(jnp.float32)

    rwd = fwd(obs, act, done, prepared)
    jax.block_until_ready(rwd)
    ref = _reference(obs, act, done, params, max_reward)
    assert rwd.shape == (batch, 1)
    assert jnp.allclose(rwd, ref, atol=5e-2, rtol=5e-2), "mismatch vs reference (small batch)"

    # --- larger batch: multi-tile grid + ragged (unpadded) last block ---
    batch2 = 1040   # block_rows=512 -> grid of 3, last block ragged (16 valid rows)
    k_obs2, k_act2, k_done2 = jax.random.split(jax.random.PRNGKey(1), 3)
    obs2 = jax.random.normal(k_obs2, (batch2, observation_dim), jnp.float32)
    act2 = jax.random.normal(k_act2, (batch2, action_dim), jnp.float32)
    done2 = (jax.random.uniform(k_done2, (batch2, 1)) < 0.3).astype(jnp.float32)

    fwd_tiled = jax.jit(functools.partial(reward_forward, max_reward=max_reward,
                                          clip=True, block_rows=512))
    rwd2 = fwd_tiled(obs2, act2, done2, prepared)
    jax.block_until_ready(rwd2)
    ref2 = _reference(obs2, act2, done2, params, max_reward)
    assert rwd2.shape == (batch2, 1)
    assert jnp.allclose(rwd2, ref2, atol=5e-2, rtol=5e-2), "mismatch vs reference (tiled batch)"

    print("KERNEL_OK")
</pallas_src>

<mosaic_0001>
module attributes {stable_mosaic.version = 11 : i64} {
  func.func @_reward_mlp_kernel(%arg0: i32, %arg1: memref<8x16xf32, #tpu.memory_space<vmem>>, %arg2: memref<8x4xf32, #tpu.memory_space<vmem>>, %arg3: memref<8x1xbf16, #tpu.memory_space<vmem>>, %arg4: memref<16x32xbf16, #tpu.memory_space<vmem>>, %arg5: memref<4x32xbf16, #tpu.memory_space<vmem>>, %arg6: memref<1x32xf32, #tpu.memory_space<vmem>>, %arg7: memref<1x32xf32, #tpu.memory_space<vmem>>, %arg8: memref<32x32xbf16, #tpu.memory_space<vmem>>, %arg9: memref<1x32xf32, #tpu.memory_space<vmem>>, %arg10: memref<1x32xf32, #tpu.memory_space<vmem>>, %arg11: memref<1x1xf32, #tpu.memory_space<vmem>>, %arg12: memref<1x8xf32, #tpu.memory_space<vmem>>) attributes {dimension_semantics = [#tpu.dimension_semantics<parallel>], iteration_bounds = array<i64: 1>, scalar_prefetch = 0 : i64, scratch_operands = 0 : i64, tpu.core_type = #tpu.core_type<tc>, window_params = [{transform_indices = @transform_0, window_bounds = array<i64: 8, 16>}, {transform_indices = @transform_1, window_bounds = array<i64: 8, 4>}, {transform_indices = @transform_2, window_bounds = array<i64: 8, 1>}, {pipeline_mode = #tpu.pipeline_mode<synchronous>, transform_indices = @transform_3, window_bounds = array<i64: 16, 32>}, {pipeline_mode = #tpu.pipeline_mode<synchronous>, transform_indices = @transform_4, window_bounds = array<i64: 4, 32>}, {pipeline_mode = #tpu.pipeline_mode<synchronous>, transform_indices = @transform_5, window_bounds = array<i64: 1, 32>}, {pipeline_mode = #tpu.pipeline_mode<synchronous>, transform_indices = @transform_6, window_bounds = array<i64: 1, 32>}, {pipeline_mode = #tpu.pipeline_mode<synchronous>, transform_indices = @transform_7, window_bounds = array<i64: 32, 32>}, {pipeline_mode = #tpu.pipeline_mode<synchronous>, transform_indices = @transform_8, window_bounds = array<i64: 1, 32>}, {pipeline_mode = #tpu.pipeline_mode<synchronous>, transform_indices = @transform_9, window_bounds = array<i64: 1, 32>}, {pipeline_mode = #tpu.pipeline_mode<synchronous>, transform_indices = @transform_10, window_bounds = array<i64: 1, 1>}, {transform_indices = @transform_11, window_bounds = array<i64: 1, 8>}]} {
    %c0 = arith.constant 0 : index
    %c0_0 = arith.constant 0 : index
    %0 = vector.load %arg1[%c0, %c0_0] : memref<8x16xf32, #tpu.memory_space<vmem>>, vector<8x16xf32>
    %1 = arith.truncf %0 : vector<8x16xf32> to vector<8x16xbf16>
    %c0_1 = arith.constant 0 : index
    %c0_2 = arith.constant 0 : index
    %2 = vector.load %arg2[%c0_1, %c0_2] : memref<8x4xf32, #tpu.memory_space<vmem>>, vector<8x4xf32>
    %3 = arith.truncf %2 : vector<8x4xf32> to vector<8x4xbf16>
    %c0_3 = arith.constant 0 : index
    %c0_4 = arith.constant 0 : index
    %4 = vector.load %arg3[%c0_3, %c0_4] : memref<8x1xbf16, #tpu.memory_space<vmem>>, vector<8x1xbf16>
    %5 = arith.extf %4 : vector<8x1xbf16> to vector<8x1xf32>
    %c0_5 = arith.constant 0 : index
    %c0_6 = arith.constant 0 : index
    %6 = vector.load %arg4[%c0_5, %c0_6] : memref<16x32xbf16, #tpu.memory_space<vmem>>, vector<16x32xbf16>
    %cst = arith.constant dense<0.000000e+00> : vector<8x32xf32>
    %7 = tpu.matmul %1, %6, %cst {dimension_numbers = #tpu.dot_dimension_numbers<[1], [0], [0], [1], [0, 0, 1, 1], [], []>} : vector<8x16xbf16>, vector<16x32xbf16>, vector<8x32xf32> -> vector<8x32xf32>
    %c0_7 = arith.constant 0 : index
    %c0_8 = arith.constant 0 : index
    %8 = vector.load %arg5[%c0_7, %c0_8] : memref<4x32xbf16, #tpu.memory_space<vmem>>, vector<4x32xbf16>
    %cst_9 = arith.constant dense<0.000000e+00> : vector<8x32xf32>
    %9 = tpu.matmul %3, %8, %cst_9 {dimension_numbers = #tpu.dot_dimension_numbers<[1], [0], [0], [1], [0, 0, 1, 1], [], []>} : vector<8x4xbf16>, vector<4x32xbf16>, vector<8x32xf32> -> vector<8x32xf32>
    %10 = arith.addf %7, %9 : vector<8x32xf32>
    %cst_10 = arith.constant 1.000000e+00 : f32
    %11 = vector.broadcast %cst_10 : f32 to vector<8x1xf32>
    %12 = arith.subf %11, %5 : vector<8x1xf32>
    %13 = vector.broadcast %12 : vector<8x1xf32> to vector<8x32xf32>
    %14 = arith.mulf %13, %10 : vector<8x32xf32>
    %c0_11 = arith.constant 0 : index
    %c0_12 = arith.constant 0 : index
    %15 = vector.load %arg6[%c0_11, %c0_12] : memref<1x32xf32, #tpu.memory_space<vmem>>, vector<1x32xf32>
    %16 = vector.broadcast %5 : vector<8x1xf32> to vector<8x32xf32>
    %17 = vector.broadcast %15 : vector<1x32xf32> to vector<8x32xf32>
    %18 = arith.mulf %16, %17 : vector<8x32xf32>
    %19 = arith.addf %14, %18 : vector<8x32xf32>
    %c0_13 = arith.constant 0 : index
    %c0_14 = arith.constant 0 : index
    %20 = vector.load %arg7[%c0_13, %c0_14] : memref<1x32xf32, #tpu.memory_space<vmem>>, vector<1x32xf32>
    %21 = vector.broadcast %20 : vector<1x32xf32> to vector<8x32xf32>
    %22 = arith.addf %19, %21 : vector<8x32xf32>
    %cst_15 = arith.constant 0.000000e+00 : f32
    %23 = vector.broadcast %cst_15 : f32 to vector<8x32xf32>
    %24 = arith.maximumf %22, %23 : vector<8x32xf32>
    %25 = arith.truncf %24 : vector<8x32xf32> to vector<8x32xbf16>
    %c0_16 = arith.constant 0 : index
    %c0_17 = arith.constant 0 : index
    %26 = vector.load %arg8[%c0_16, %c0_17] : memref<32x32xbf16, #tpu.memory_space<vmem>>, vector<32x32xbf16>
    %cst_18 = arith.constant dense<0.000000e+00> : vector<8x32xf32>
    %27 = tpu.matmul %25, %26, %cst_18 {dimension_numbers = #tpu.dot_dimension_numbers<[1], [0], [0], [1], [0, 0, 1, 1], [], []>} : vector<8x32xbf16>, vector<32x32xbf16>, vector<8x32xf32> -> vector<8x32xf32>
    %c0_19 = arith.constant 0 : index
    %c0_20 = arith.constant 0 : index
    %28 = vector.load %arg9[%c0_19, %c0_20] : memref<1x32xf32, #tpu.memory_space<vmem>>, vector<1x32xf32>
    %29 = vector.broadcast %28 : vector<1x32xf32> to vector<8x32xf32>
    %30 = arith.addf %27, %29 : vector<8x32xf32>
    %cst_21 = arith.constant 0.000000e+00 : f32
    %31 = vector.broadcast %cst_21 : f32 to vector<8x32xf32>
    %32 = arith.maximumf %30, %31 : vector<8x32xf32>
    %c0_22 = arith.constant 0 : index
    %c0_23 = arith.constant 0 : index
    %33 = vector.load %arg10[%c0_22, %c0_23] : memref<1x32xf32, #tpu.memory_space<vmem>>, vector<1x32xf32>
    %cst_24 = arith.constant dense<0.000000e+00> : vector<1x8xf32>
    %34 = tpu.matmul %33, %32, %cst_24 {dimension_numbers = #tpu.dot_dimension_numbers<[1], [1], [0], [0], [0, 0, 1, 0], [], []>} : vector<1x32xf32>, vector<8x32xf32>, vector<1x8xf32> -> vector<1x8xf32>
    %c0_25 = arith.constant 0 : index
    %c0_26 = arith.constant 0 : index
    %35 = vector.load %arg11[%c0_25, %c0_26] : memref<1x1xf32, #tpu.memory_space<vmem>>, vector<1x1xf32>
    %36 = vector.broadcast %35 : vector<1x1xf32> to vector<1x8xf32>
    %37 = arith.addf %34, %36 : vector<1x8xf32>
    %cst_27 = arith.constant -1.000000e+01 : f32
    %cst_28 = arith.constant 1.000000e+01 : f32
    %38 = vector.broadcast %cst_27 : f32 to vector<1x8xf32>
    %39 = arith.maximumf %38, %37 : vector<1x8xf32>
    %40 = vector.broadcast %cst_28 : f32 to vector<1x8xf32>
    %41 = arith.minimumf %40, %39 : vector<1x8xf32>
    %c0_29 = arith.constant 0 : index
    %c0_30 = arith.constant 0 : index
    %42 = vector.load %arg12[%c0_29, %c0_30] : memref<1x8xf32, #tpu.memory_space<vmem>>, vector<1x8xf32>
    tpu.vector_store %arg12[%c0_29, %c0_30], %41 {strides = array<i32>} : memref<1x8xf32, #tpu.memory_space<vmem>>, vector<1x8xf32>,
    return
  }
  func.func @transform_0(%arg0: i32) -> (i32, i32) {
    %c0_i32 = arith.constant 0 : i32
    %c0_i32_0 = arith.constant 0 : i32
    return %arg0, %c0_i32 : i32, i32
  }
  func.func @transform_1(%arg0: i32) -> (i32, i32) {
    %c0_i32 = arith.constant 0 : i32
    %c0_i32_0 = arith.constant 0 : i32
    return %arg0, %c0_i32 : i32, i32
  }
  func.func @transform_2(%arg0: i32) -> (i32, i32) {
    %c0_i32 = arith.constant 0 : i32
    %c0_i32_0 = arith.constant 0 : i32
    return %arg0, %c0_i32 : i32, i32
  }
  func.func @transform_3(%arg0: i32) -> (i32, i32) {
    %c0_i32 = arith.constant 0 : i32
    %c0_i32_0 = arith.constant 0 : i32
    %c0_i32_1 = arith.constant 0 : i32
    return %c0_i32, %c0_i32_0 : i32, i32
  }
  func.func @transform_4(%arg0: i32) -> (i32, i32) {
    %c0_i32 = arith.constant 0 : i32
    %c0_i32_0 = arith.constant 0 : i32
    %c0_i32_1 = arith.constant 0 : i32
    return %c0_i32, %c0_i32_0 : i32, i32
  }
  func.func @transform_5(%arg0: i32) -> (i32, i32) {
    %c0_i32 = arith.constant 0 : i32
    %c0_i32_0 = arith.constant 0 : i32
    %c0_i32_1 = arith.constant 0 : i32
    return %c0_i32, %c0_i32_0 : i32, i32
  }
  func.func @transform_6(%arg0: i32) -> (i32, i32) {
    %c0_i32 = arith.constant 0 : i32
    %c0_i32_0 = arith.constant 0 : i32
    %c0_i32_1 = arith.constant 0 : i32
    return %c0_i32, %c0_i32_0 : i32, i32
  }
  func.func @transform_7(%arg0: i32) -> (i32, i32) {
    %c0_i32 = arith.constant 0 : i32
    %c0_i32_0 = arith.constant 0 : i32
    %c0_i32_1 = arith.constant 0 : i32
    return %c0_i32, %c0_i32_0 : i32, i32
  }
  func.func @transform_8(%arg0: i32) -> (i32, i32) {
    %c0_i32 = arith.constant 0 : i32
    %c0_i32_0 = arith.constant 0 : i32
    %c0_i32_1 = arith.constant 0 : i32
    return %c0_i32, %c0_i32_0 : i32, i32
  }
  func.func @transform_9(%arg0: i32) -> (i32, i32) {
    %c0_i32 = arith.constant 0 : i32
    %c0_i32_0 = arith.constant 0 : i32
    %c0_i32_1 = arith.constant 0 : i32
    return %c0_i32, %c0_i32_0 : i32, i32
  }
  func.func @transform_10(%arg0: i32) -> (i32, i32) {
    %c0_i32 = arith.constant 0 : i32
    %c0_i32_0 = arith.constant 0 : i32
    %c0_i32_1 = arith.constant 0 : i32
    return %c0_i32, %c0_i32_0 : i32, i32
  }
  func.func @transform_11(%arg0: i32) -> (i32, i32) {
    %c0_i32 = arith.constant 0 : i32
    %c0_i32_0 = arith.constant 0 : i32
    return %arg0, %c0_i32 : i32, i32
  }
}

</mosaic_0001>

<llo_original>
// kernel: reward_forward.1
$region0: #{reward_forward.1}
  #allocation0 [shape = 'u32[]', space=smem, size = 0x4, offset = 0x4, fixed_abs, tag = 'smem constant byte address 0x4 - core index']
  #allocation1 [shape = 'u32[144,128]{1,0:T(1,128)}', space=vmem, size = 0x12000, scoped, tag = 'internal scratch']
  #allocation2 [shape = 'f32[1,1]{1,0:T(1,128)S(1)}', space=vmem, size = 0x200, scoped, tag = 'scoped memory for reward_forward.1']
  %s0 = inlined_call_operand.vmem [shape: f32[8,16], index: 0, kind: input, shape index: {}]
  %s1 = inlined_call_operand.vmem [shape: f32[8,4], index: 1, kind: input, shape index: {}]
  %s2 = inlined_call_operand.vmem [shape: bf16[8,1], index: 2, kind: input, shape index: {}]
  %s3 = inlined_call_operand.vmem [shape: bf16[16,32], index: 3, kind: input, shape index: {}]
  %s4 = inlined_call_operand.vmem [shape: bf16[4,32], index: 4, kind: input, shape index: {}]
  %s5 = inlined_call_operand.vmem [shape: f32[1,32], index: 5, kind: input, shape index: {}]
  %s6 = inlined_call_operand.vmem [shape: f32[1,32], index: 6, kind: input, shape index: {}]
  %s7 = inlined_call_operand.vmem [shape: bf16[32,32], index: 7, kind: input, shape index: {}]
  %s8 = inlined_call_operand.vmem [shape: f32[1,32], index: 8, kind: input, shape index: {}]
  %s9 = inlined_call_operand.vmem [shape: f32[1,32], index: 9, kind: input, shape index: {}]
  %s10 = inlined_call_operand.<no memory space> [shape: f32[1,1], index: 10, kind: input, shape index: {}]
  %s11 = inlined_call_operand.hbm [shape: f32[1,8], index: 11, kind: output, shape index: {}]
  %s12 = sld [smem:[#allocation0]]
  $region54: #{reward_forward.1} parent=0
    _
  %s14 = ssub.s32 1, %s12
  %s15 = scalar_select 0, %s14, %s12
  %v16 = vstv %s10
  %17 = vst [vmem:[#allocation2] sm:$0x1] %v16
  $region1: #{reward_forward.1} parent=0
    #allocation3 [shape = 'u8[512]{0}', space=vmem, size = 0x400, scoped, tag = 'output window, operand 0, single buffered']
    #allocation4 [shape = 's32[1]{0}', space=sflag, size = 0x4, scoped, tag = 'scoped memory for reward_forward.1']
    %18 = vsyncpa [#allocation4], 0
    // Predicated region
    $region2: #{reward_forward.1} parent=1 // pred_check
      _
    $region3: #{reward_forward.1} parent=1 // pred_check_branch
      %20 = sbr.rel (0) target = $region5
    $region4: #{reward_forward.1} parent=1 // pred_region
      _
    $region5: #{reward_forward.1} parent=1 // pred_fallthru
      _
    // Predicated region
    $region6: #{reward_forward.1} parent=1 // pred_check
      _
    $region7: #{reward_forward.1} parent=1 // pred_check_branch
      %22 = sbr.rel (0) target = $region9
    $region8: #{reward_forward.1} parent=1 // pred_region
      _
    $region9: #{reward_forward.1} parent=1 // pred_fallthru
      _
    // Predicated region
    $region10: #{reward_forward.1} parent=1 // pred_check
      _
    $region11: #{reward_forward.1} parent=1 // pred_check_branch
      %24 = sbr.rel (0) target = $region13
    $region12: #{reward_forward.1} parent=1 // pred_region
      _
    $region13: #{reward_forward.1} parent=1 // pred_fallthru
      _
    // Predicated region
    $region14: #{reward_forward.1} parent=1 // pred_check
      _
    $region15: #{reward_forward.1} parent=1 // pred_check_branch
      %26 = sbr.rel (0) target = $region17
    $region16: #{reward_forward.1} parent=1 // pred_region
      _
    $region17: #{reward_forward.1} parent=1 // pred_fallthru
      _
    // Predicated region
    $region18: #{reward_forward.1} parent=1 // pred_check
      _
    $region19: #{reward_forward.1} parent=1 // pred_check_branch
      %28 = sbr.rel (0) target = $region21
    $region20: #{reward_forward.1} parent=1 // pred_region
      _
    $region21: #{reward_forward.1} parent=1 // pred_fallthru
      _
    // Predicated region
    $region22: #{reward_forward.1} parent=1 // pred_check
      _
    $region23: #{reward_forward.1} parent=1 // pred_check_branch
      %30 = sbr.rel (0) target = $region25
    $region24: #{reward_forward.1} parent=1 // pred_region
      _
    $region25: #{reward_forward.1} parent=1 // pred_fallthru
      _
    // Predicated region
    $region26: #{reward_forward.1} parent=1 // pred_check
      _
    $region27: #{reward_forward.1} parent=1 // pred_check_branch
      %32 = sbr.rel (0) target = $region29
    $region28: #{reward_forward.1} parent=1 // pred_region
      _
    $region29: #{reward_forward.1} parent=1 // pred_fallthru
      _
    // Predicated region
    $region30: #{reward_forward.1} parent=1 // pred_check
      _
    $region31: #{reward_forward.1} parent=1 // pred_check_branch
      %34 = sbr.rel (0) target = $region33
    $region32: #{reward_forward.1} parent=1 // pred_region
      _
    $region33: #{reward_forward.1} parent=1 // pred_fallthru
      _
    // Predicated region
    $region34: #{reward_forward.1} parent=1 // pred_check
      _
    $region35: #{reward_forward.1} parent=1 // pred_check_branch
      %36 = sbr.rel (0) target = $region37
    $region36: #{reward_forward.1} parent=1 // pred_region
      _
    $region37: #{reward_forward.1} parent=1 // pred_fallthru
      _
    // Predicated region
    $region38: #{reward_forward.1} parent=1 // pred_check
      _
    $region39: #{reward_forward.1} parent=1 // pred_check_branch
      %38 = sbr.rel (0) target = $region41
    $region40: #{reward_forward.1} parent=1 // pred_region
      _
    $region41: #{reward_forward.1} parent=1 // pred_fallthru
      _
    // Predicated region
    $region42: #{reward_forward.1} parent=1 // pred_check
      _
    $region43: #{reward_forward.1} parent=1 // pred_check_branch
      %40 = sbr.rel (0) target = $region45
    $region44: #{reward_forward.1} parent=1 // pred_region
      _
    $region45: #{reward_forward.1} parent=1 // pred_fallthru
      _
    %v42 = vld [vmem:[%s0] sm:$0xff]
    %v43 = vpack.c.bf16 %v42, %v42
    %v44 = vld [vmem:[%s1] sm:$0xff]
    %v45 = vpack.c.bf16 %v44, %v44
    %v46 = vld [vmem:[%s2] sm:$0xf]
    %v47 = vunpack.c.l.bf16 %v46
    %v48 = vld [vmem:[%s3] sm:$0xf]
    %v49 = vld [vmem:[%s3 + $0x4] sm:$0xf]
    %v50 = vld [vmem:[%s4] sm:$0x3]
    %vm51 = vcmask 31744
    %v53 = vsel %vm51, %v45, 0
    %vm55 = vcmask 1041408
    %v57 = vsel %vm55, %v50, 0
    %59 = vmatprep.subr.bf16.mxu0 0
    %60 = vmatpush1.bf16.msra.mxu0 %v57
    %61 = vmatprep.subr.bf16.mxu0 0
    %62 = vmatpush1.bf16.msra.mxu0 0
    %63 = vmatprep.subr.bf16.mxu0 0
    %64 = vmatpush1.bf16.msra.mxu0 0
    %65 = vmatprep.subr.bf16.mxu0 0
    %66 = vmatpush1.bf16.msra.mxu0 0
    %67 = vmatprep.subr.bf16.mxu0 0
    %68 = vmatpush1.bf16.msra.mxu0 0
    %69 = vmatprep.subr.bf16.mxu0 0
    %70 = vmatpush1.bf16.msra.mxu0 0
    %71 = vmatprep.subr.bf16.mxu0 0
    %72 = vmatpush1.bf16.msra.mxu0 0
    %73 = vmatprep.subr.bf16.mxu0 0
    %74 = vmatpush1.bf16.msra.mxu0 0
    %75 = vmatprep.subr.bf16.mxu0 0
    %76 = vmatpush1.bf16.msra.mxu0 0
    %77 = vmatprep.subr.bf16.mxu0 0
    %78 = vmatpush1.bf16.msra.mxu0 0
    %79 = vmatprep.subr.bf16.mxu0 0
    %80 = vmatpush1.bf16.msra.mxu0 0
    %81 = vmatprep.subr.bf16.mxu0 0
    %82 = vmatpush1.bf16.msra.mxu0 0
    %83 = vmatprep.subr.bf16.mxu0 0
    %84 = vmatpush1.bf16.msra.mxu0 0
    %85 = vmatprep.subr.bf16.mxu0 0
    %86 = vmatpush1.bf16.msra.mxu0 0
    %87 = vmatprep.subr.bf16.mxu0 0
    %88 = vmatpush1.bf16.msra.mxu0 0
    %89 = vmatprep.subr.bf16.mxu0 0
    %90 = vmatpush1.bf16.msra.mxu0 0
    %91 = vmatprep.mubr.bf16.mxu0 0
    %92 = vmatmul.mubr.bf16.gmra.mrb[0].mxu0 %v53
    %v93 = vpop.f32.mrb[0].mxu0
    %v94 = vadd.f32 0.0, %v93
    %v95 = vpop.f32.mrb[0].mxu0
    %v96 = vpop.f32.mrb[0].mxu0
    %v97 = vpop.f32.mrb[0].mxu0
    %98 = vdwg.mxu0
    %v101 = vunpack.c.l.b16 %v48
    %v102 = vunpack.c.l.b16 %v49
    %v103 = vpack.c.b16 %v102, %v101
    %vm105 = vcmask 130048
    %v107 = vsel %vm105, %v43, 0
    %109 = vmatprep.subr.bf16.mxu0 0
    %110 = vmatpush1.bf16.msra.mxu0 %v103
    %111 = vmatprep.subr.bf16.mxu0 0
    %112 = vmatpush1.bf16.msra.mxu0 0
    %113 = vmatprep.subr.bf16.mxu0 0
    %114 = vmatpush1.bf16.msra.mxu0 0
    %115 = vmatprep.subr.bf16.mxu0 0
    %116 = vmatpush1.bf16.msra.mxu0 0
    %117 = vmatprep.subr.bf16.mxu0 0
    %118 = vmatpush1.bf16.msra.mxu0 0
    %119 = vmatprep.subr.bf16.mxu0 0
    %120 = vmatpush1.bf16.msra.mxu0 0
    %121 = vmatprep.subr.bf16.mxu0 0
    %122 = vmatpush1.bf16.msra.mxu0 0
    %123 = vmatprep.subr.bf16.mxu0 0
    %124 = vmatpush1.bf16.msra.mxu0 0
    %125 = vmatprep.subr.bf16.mxu0 0
    %126 = vmatpush1.bf16.msra.mxu0 0
    %127 = vmatprep.subr.bf16.mxu0 0
    %128 = vmatpush1.bf16.msra.mxu0 0
    %129 = vmatprep.subr.bf16.mxu0 0
    %130 = vmatpush1.bf16.msra.mxu0 0
    %131 = vmatprep.subr.bf16.mxu0 0
    %132 = vmatpush1.bf16.msra.mxu0 0
    %133 = vmatprep.subr.bf16.mxu0 0
    %134 = vmatpush1.bf16.msra.mxu0 0
    %135 = vmatprep.subr.bf16.mxu0 0
    %136 = vmatpush1.bf16.msra.mxu0 0
    %137 = vmatprep.subr.bf16.mxu0 0
    %138 = vmatpush1.bf16.msra.mxu0 0
    %139 = vmatprep.subr.bf16.mxu0 0
    %140 = vmatpush1.bf16.msra.mxu0 0
    %141 = vmatprep.mubr.bf16.mxu0 0
    %142 = vmatmul.mubr.bf16.gmra.mrb[0].mxu0 %v107
    %v143 = vpop.f32.mrb[0].mxu0
    %v144 = vadd.f32 %v94, %v143
    %v145 = vpop.f32.mrb[0].mxu0
    %v146 = vpop.f32.mrb[0].mxu0
    %v147 = vpop.f32.mrb[0].mxu0
    %148 = vdwg.mxu0
    %v149 = vsub.f32 1.0, %v47
    %151 = vset.pattern.permute.xlu0 0
    %152 = vperm.xlu0 %151, %v149
    %v153 = vpop.permute.xlu0 %152
    %v155 = vmul.f32 %v153, %v144
    %v156 = vld [vmem:[%s5] sm:$0x1]
    %158 = vset.pattern.permute.xlu0 0
    %159 = vperm.xlu0 %158, %v47
    %v160 = vpop.permute.xlu0 %159
    %v163 = vlaneseq
    %v164 = vshrl.u32 %v163, 7
    %v165 = vsub.s32 0, %v164
    %v166 = vrot.slane %v156, %v165
    %v168 = vmul.f32 %v160, %v166
    %v169 = vadd.f32 %v155, %v168
    %v170 = vld [vmem:[%s6] sm:$0x1]
    %v172 = vlaneseq
    %v173 = vshrl.u32 %v172, 7
    %v174 = vsub.s32 0, %v173
    %v175 = vrot.slane %v170, %v174
    %v177 = vadd.f32 %v169, %v175
    %v178 = vmax.f32 %v177, 0.0
    %v179 = vpack.c.bf16 %v178, %v178
    %v180 = vld [vmem:[%s7] sm:$0xf]
    %v181 = vld [vmem:[%s7 + $0x4] sm:$0xf]
    %v182 = vld [vmem:[%s7 + $0x8] sm:$0xf]
    %v183 = vld [vmem:[%s7 + $0xc] sm:$0xf]
    %v184 = vld [vmem:[%s8] sm:$0x1]
    %v186 = vlaneseq
    %v187 = vshrl.u32 %v186, 7
    %v188 = vsub.s32 0, %v187
    %v189 = vrot.slane %v184, %v188
    %v195 = vunpack.c.l.b16 %v180
    %v196 = vunpack.c.l.b16 %v181
    %v197 = vunpack.c.l.b16 %v182
    %v198 = vunpack.c.l.b16 %v183
    %v199 = vpack.c.b16 %v196, %v195
    %v200 = vpack.c.b16 %v198, %v197
    %vm203 = vcmask 261120
    %v205 = vsel %vm203, %v179, 0
    %207 = vmatprep.subr.bf16.mxu0 0
    %208 = vmatpush1.bf16.msra.mxu0 %v199
    %209 = vmatprep.subr.bf16.mxu0 0
    %210 = vmatpush1.bf16.msra.mxu0 %v200
    %211 = vmatprep.subr.bf16.mxu0 0
    %212 = vmatpush1.bf16.msra.mxu0 0
    %213 = vmatprep.subr.bf16.mxu0 0
    %214 = vmatpush1.bf16.msra.mxu0 0
    %215 = vmatprep.subr.bf16.mxu0 0
    %216 = vmatpush1.bf16.msra.mxu0 0
    %217 = vmatprep.subr.bf16.mxu0 0
    %218 = vmatpush1.bf16.msra.mxu0 0
    %219 = vmatprep.subr.bf16.mxu0 0
    %220 = vmatpush1.bf16.msra.mxu0 0
    %221 = vmatprep.subr.bf16.mxu0 0
    %222 = vmatpush1.bf16.msra.mxu0 0
    %223 = vmatprep.subr.bf16.mxu0 0
    %224 = vmatpush1.bf16.msra.mxu0 0
    %225 = vmatprep.subr.bf16.mxu0 0
    %226 = vmatpush1.bf16.msra.mxu0 0
    %227 = vmatprep.subr.bf16.mxu0 0
    %228 = vmatpush1.bf16.msra.mxu0 0
    %229 = vmatprep.subr.bf16.mxu0 0
    %230 = vmatpush1.bf16.msra.mxu0 0
    %231 = vmatprep.subr.bf16.mxu0 0
    %232 = vmatpush1.bf16.msra.mxu0 0
    %233 = vmatprep.subr.bf16.mxu0 0
    %234 = vmatpush1.bf16.msra.mxu0 0
    %235 = vmatprep.subr.bf16.mxu0 0
    %236 = vmatpush1.bf16.msra.mxu0 0
    %237 = vmatprep.subr.bf16.mxu0 0
    %238 = vmatpush1.bf16.msra.mxu0 0
    %239 = vmatprep.mubr.bf16.mxu0 0
    %240 = vmatmul.mubr.bf16.gmra.mrb[0].mxu0 %v205
    %v241 = vpop.f32.mrb[0].mxu0
    %v242 = vadd.f32 %v189, %v241
    %v243 = vpop.f32.mrb[0].mxu0
    %v244 = vpop.f32.mrb[0].mxu0
    %v245 = vpop.f32.mrb[0].mxu0
    %246 = vdwg.mxu0
    %v247 = vmax.f32 %v242, 0.0
    %v248 = vld [vmem:[%s9] sm:$0x1]
    %v249 = vld [vmem:[#allocation2] sm:$0x1]
    %251 = vset.pattern.permute.xlu0 0
    %252 = vperm.xlu0 %251, %v249
    %v253 = vpop.permute.xlu0 %252
    %v255 = vlaneseq
    %v256 = vshrl.u32 %v255, 7
    %v257 = vsub.s32 0, %v256
    %v258 = vrot.slane %v253, %v257
    %v260 = vsel %vm203, %v248, 0
    %v263 = vsel %vm203, %v247, 0
    %265 = vmatprep.subr.mxu0 0.0
    %266 = vmatpush1.xpose.msra.mxu0 %v263
    %267 = vmatprep.subr.mxu0 0.0
    %268 = vmatpush1.xpose.msra.mxu0 0.0
    %269 = vmatprep.subr.mxu0 0.0
    %270 = vmatpush1.xpose.msra.mxu0 0.0
    %271 = vmatprep.subr.mxu0 0.0
    %272 = vmatpush1.xpose.msra.mxu0 0.0
    %273 = vmatprep.subr.mxu0 0.0
    %274 = vmatpush1.xpose.msra.mxu0 0.0
    %275 = vmatprep.subr.mxu0 0.0
    %276 = vmatpush1.xpose.msra.mxu0 0.0
    %277 = vmatprep.subr.mxu0 0.0
    %278 = vmatpush1.xpose.msra.mxu0 0.0
    %279 = vmatprep.subr.mxu0 0.0
    %280 = vmatpush1.xpose.msra.mxu0 0.0
    %281 = vmatprep.subr.mxu0 0.0
    %282 = vmatpush1.xpose.msra.mxu0 0.0
    %283 = vmatprep.subr.mxu0 0.0
    %284 = vmatpush1.xpose.msra.mxu0 0.0
    %285 = vmatprep.subr.mxu0 0.0
    %286 = vmatpush1.xpose.msra.mxu0 0.0
    %287 = vmatprep.subr.mxu0 0.0
    %288 = vmatpush1.xpose.msra.mxu0 0.0
    %289 = vmatprep.subr.mxu0 0.0
    %290 = vmatpush1.xpose.msra.mxu0 0.0
    %291 = vmatprep.subr.mxu0 0.0
    %292 = vmatpush1.xpose.msra.mxu0 0.0
    %293 = vmatprep.subr.mxu0 0.0
    %294 = vmatpush1.xpose.msra.mxu0 0.0
    %295 = vmatprep.subr.mxu0 0.0
    %296 = vmatpush1.xpose.msra.mxu0 0.0
    %297 = vmatprep.subr.mxu0 0.0
    %298 = vmatpush1.xpose.msra.mxu0 0.0
    %299 = vmatprep.subr.mxu0 0.0
    %300 = vmatpush1.xpose.msra.mxu0 0.0
    %301 = vmatprep.subr.mxu0 0.0
    %302 = vmatpush1.xpose.msra.mxu0 0.0
    %303 = vmatprep.subr.mxu0 0.0
    %304 = vmatpush1.xpose.msra.mxu0 0.0
    %305 = vmatprep.subr.mxu0 0.0
    %306 = vmatpush1.xpose.msra.mxu0 0.0
    %307 = vmatprep.subr.mxu0 0.0
    %308 = vmatpush1.xpose.msra.mxu0 0.0
    %309 = vmatprep.subr.mxu0 0.0
    %310 = vmatpush1.xpose.msra.mxu0 0.0
    %311 = vmatprep.subr.mxu0 0.0
    %312 = vmatpush1.xpose.msra.mxu0 0.0
    %313 = vmatprep.subr.mxu0 0.0
    %314 = vmatpush1.xpose.msra.mxu0 0.0
    %315 = vmatprep.subr.mxu0 0.0
    %316 = vmatpush1.xpose.msra.mxu0 0.0
    %317 = vmatprep.subr.mxu0 0.0
    %318 = vmatpush1.xpose.msra.mxu0 0.0
    %319 = vmatprep.subr.mxu0 0.0
    %320 = vmatpush1.xpose.msra.mxu0 0.0
    %321 = vmatprep.subr.mxu0 0.0
    %322 = vmatpush1.xpose.msra.mxu0 0.0
    %323 = vmatprep.subr.mxu0 0.0
    %324 = vmatpush1.xpose.msra.mxu0 0.0
    %325 = vmatprep.subr.mxu0 0.0
    %326 = vmatpush1.xpose.msra.mxu0 0.0
    %327 = vmatprep.subr.mxu0 0.0
    %328 = vmatpush1.xpose.msra.mxu0 0.0
    %329 = vmatprep.mubr.f32.mxu0 0.0
    %330 = vmatmul.mubr.f32.gmra.mrb[0].mxu0 %v260
    %v331 = vpop.f32.mrb[0].mxu0
    %v332 = vadd.f32 %v258, %v331
    %v333 = vpop.f32.mrb[0].mxu0
    %334 = vdwg.mxu0
    %v335 = vmax.f32 %v332, -10.0
    %v336 = vmin.f32 %v335, 10.0
    %vm337 = vcmask 57344
    %338 = vst.msk [vmem:[#allocation3] sm:$0x1] %vm337, %v336
    // Predicated region
    $region46: #{reward_forward.1} parent=1 // pred_check
      _
    $region47: #{reward_forward.1} parent=1 // pred_check_branch
      %340 = sbr.rel (0) target = $region49
    $region48: #{reward_forward.1} parent=1 // pred_region
      %s342 = ssub.s32 16, 16
      %343 = vsyncadd [#allocation4], %s342
      %s345 = sshll.u32 [#allocation3], 4
      %s346 = int_to_ptr.vmem [resolvable:$true] %s345
      %348 = dma.vmem_to_hbm [thread:$0]  %s346, 16, %s11, [#allocation4]
    $region49: #{reward_forward.1} parent=1 // pred_fallthru
      _
    // Predicated region
    $region50: #{reward_forward.1} parent=1 // pred_check
      _
    $region51: #{reward_forward.1} parent=1 // pred_check_branch
      %350 = sbr.rel (0) target = $region53
    $region52: #{reward_forward.1} parent=1 // pred_region
      %351 = dma.done [#allocation4], 16
    $region53: #{reward_forward.1} parent=1 // pred_fallthru
      _
    %352 = vsyncpa [#allocation4], 1

</llo_original>
